<compile_context>
chip_gen: v7x
topology: tpu7x:2x2x1
jax: 0.10.0
libtpu: 0.0.40
codegen_flags: <defaults>
</compile_context>

<pallas_src>
import functools

import jax
import jax.numpy as jnp
from jax import lax
from jax.experimental import pallas as pl
from jax.experimental.pallas import tpu as pltpu


def _round_up(x, m):
    return ((x + m - 1) // m) * m


def _vmem_capacity_bytes():
    """Physical VMEM per TensorCore (128 MiB on v5e/v6e, 64 MiB on v7x)."""
    try:
        info = pltpu.get_tpu_info()
        cap = getattr(info, "vmem_capacity_bytes", None)
        if cap:
            return int(cap)
    except Exception:
        pass
    return 64 * 1024 * 1024  # conservative fallback (v7x per-TC VMEM)


def _choose_tiles(c_in, hidden, c_out, n_tok, itemsize, vmem_budget):
    """Pick (token_tile, hidden_tile) under a VMEM budget."""
    usable = int(vmem_budget * 0.6)  # headroom for compiler scratch / pipelining misc

    def tile_bytes(t_tok, t_hid):
        # double-buffered inputs/outputs + f32 scratch accumulators + f32 "h" intermediate
        w_bytes = 2 * (t_hid * c_in + c_out * t_hid + c_out * c_in + 2 * c_out) * itemsize
        per_tok = (2 * (c_in + c_out) * itemsize   # x block + out block (double-buffered)
                   + 2 * c_out * 4                 # acc + up scratch (f32)
                   + t_hid * 4)                    # f32 intermediate h
        return w_bytes + per_tok * t_tok

    probe_tok = min(512, max(128, n_tok))

    # Hidden (reduction) tile: fully resident weights when they fit, else 128-multiples.
    t_hid = hidden
    if tile_bytes(probe_tok, hidden) > usable:
        for cand in (2048, 1024, 512, 256, 128):
            if hidden % cand == 0 and tile_bytes(probe_tok, cand) <= usable:
                t_hid = cand
                break
        # else: odd/huge hidden -> keep full block (rare; may spill).

    # Token (lane) tile: take the whole spatial extent when small, else the largest
    # 128-multiple that fits the budget.
    if n_tok <= 1024:
        t_tok = n_tok
    else:
        t_tok = 128
        for cand in (8192, 4096, 2048, 1024, 512, 256, 128):
            if cand <= _round_up(n_tok, 128) and tile_bytes(cand, t_hid) <= usable:
                t_tok = cand
                break
    return t_tok, t_hid


def _ff_kernel(x_ref, w1_ref, w2_ref, wu_ref, g_ref, b_ref, o_ref,
               acc_ref, up_ref, *, eps, negative_slope):
    k = pl.program_id(2)

    x = x_ref[0]                                                       # (C_in, t_tok)
    h = jnp.dot(w1_ref[...], x, preferred_element_type=jnp.float32)    # (t_hid, t_tok)
    h = jnp.where(h >= 0, h, negative_slope * h)                       # LeakyReLU(0.01)
    # Dropout(p=0.5) is identity at inference.
    contrib = jnp.dot(w2_ref[...], h.astype(w2_ref.dtype),
                      preferred_element_type=jnp.float32)              # (C_out, t_tok)

    @pl.when(k == 0)
    def _():
        acc_ref[...] = contrib                                         # no zero-init pass
        up_ref[...] = jnp.dot(wu_ref[...], x,                          # residual 1x1 conv
                              preferred_element_type=jnp.float32)

    @pl.when(k > 0)
    def _():
        acc_ref[...] += contrib

    @pl.when(k == pl.num_programs(2) - 1)
    def _():
        y = acc_ref[...]                                               # (C_out, t_tok) f32
        mean = jnp.mean(y, axis=0, keepdims=True)
        var = jnp.mean(jnp.square(y - mean), axis=0, keepdims=True)
        y_n = (y - mean) * lax.rsqrt(var + eps)
        y_n = y_n * g_ref[...] + b_ref[...]                            # LN affine, (C_out,1) bcast
        o_ref[0] = (y_n + up_ref[...]).astype(o_ref.dtype)


@functools.partial(jax.jit, static_argnames=("compute_dtype", "tile_tokens", "tile_hidden"))
def feed_forward(x, w_conv1, w_conv2, w_up, ln_gamma, ln_beta, *,
                 compute_dtype=None, tile_tokens=None, tile_hidden=None):
    """x: (N, C_in, H, W) NCHW (PyTorch layout).
    w_conv1: (hidden, C_in)   nn.Conv2d(in, hidden, 1, bias=False).weight[..., 0, 0]
    w_conv2: (C_out, hidden)  nn.Conv2d(hidden, out, 1, bias=False).weight[..., 0, 0]
    w_up:    (C_out, C_in)    nn.Conv2d(in, out, 1, bias=False).weight[..., 0, 0]
    ln_gamma, ln_beta: (C_out,)
    compute_dtype: optional MXU operand dtype (e.g. jnp.bfloat16); accumulation stays f32.
    """
    N, C_in, H, W = x.shape
    hidden = w_conv1.shape[0]
    C_out = w_conv2.shape[0]
    T = H * W
    out_dtype = x.dtype

    cdt = jnp.dtype(compute_dtype) if compute_dtype is not None else jnp.dtype(x.dtype)
    x3 = x.reshape(N, C_in, T).astype(cdt)              # free reshape, no transpose
    w1 = w_conv1.astype(cdt)                            # native (out, in) layouts, no transpose
    w2 = w_conv2.astype(cdt)
    wu = w_up.astype(cdt)
    g2 = ln_gamma.reshape(C_out, 1).astype(jnp.float32)
    b2 = ln_beta.reshape(C_out, 1).astype(jnp.float32)

    vmem_cap = _vmem_capacity_bytes()
    vmem_budget = int(vmem_cap * 3 // 4)                # ~96 MiB on v5e/v6e, ~48 MiB on v7x

    t_tok, t_hid = _choose_tiles(C_in, hidden, C_out, T, cdt.itemsize, vmem_budget)
    if tile_tokens is not None:
        t_tok = tile_tokens
    if tile_hidden is not None:
        t_hid = tile_hidden

    n_tok_tiles = pl.cdiv(T, t_tok)
    kt = pl.cdiv(hidden, t_hid)

    # --- advisory cost estimate -----------------------------------------------------
    tok_total = N * T
    flops = (2 * tok_total * (C_in * hidden + hidden * C_out + C_in * C_out)
             + 10 * tok_total * C_out)
    w12_bytes = (w1.size + w2.size) * cdt.itemsize
    bytes_accessed = ((x3.size + wu.size) * cdt.itemsize
                      + (g2.size + b2.size) * 4
                      + N * C_out * T * out_dtype.itemsize
                      + (w12_bytes if kt == 1 else w12_bytes * N * n_tok_tiles))
    cost = pl.CostEstimate(flops=int(flops), transcendentals=int(tok_total),
                           bytes_accessed=int(bytes_accessed))
    # ---------------------------------------------------------------------------------

    kernel = functools.partial(_ff_kernel, eps=1e-5, negative_slope=0.01)

    out = pl.pallas_call(
        kernel,
        out_shape=jax.ShapeDtypeStruct((N, C_out, T), out_dtype),
        grid_spec=pltpu.PrefetchScalarGridSpec(
            num_scalar_prefetch=0,
            grid=(N, n_tok_tiles, kt),                   # hidden reduction axis last
            in_specs=[
                pl.BlockSpec((1, C_in, t_tok), lambda n, j, k: (n, 0, j)),   # x tile
                pl.BlockSpec((t_hid, C_in), lambda n, j, k: (k, 0)),         # W1 hidden-tile
                pl.BlockSpec((C_out, t_hid), lambda n, j, k: (0, k)),        # W2 hidden-tile
                pl.BlockSpec((C_out, C_in), lambda n, j, k: (0, 0)),         # W_up (resident)
                pl.BlockSpec((C_out, 1), lambda n, j, k: (0, 0)),            # LN gamma
                pl.BlockSpec((C_out, 1), lambda n, j, k: (0, 0)),            # LN beta
            ],
            out_specs=pl.BlockSpec((1, C_out, t_tok), lambda n, j, k: (n, 0, j)),
            scratch_shapes=[
                pltpu.VMEM((C_out, t_tok), jnp.float32),   # main-branch f32 accumulator
                pltpu.VMEM((C_out, t_tok), jnp.float32),   # residual up-projection (k==0)
            ],
        ),
        compiler_params=pltpu.CompilerParams(
            dimension_semantics=("parallel", "parallel", "arbitrary"),
            vmem_limit_bytes=vmem_budget,
        ),
        cost_estimate=cost,
    )(x3, w1, w2, wu, g2, b2)

    return out.reshape(N, C_out, H, W)                   # free reshape back to NCHW


def _reference(x, w_conv1, w_conv2, w_up, ln_gamma, ln_beta, eps=1e-5, slope=0.01):
    """Pure-JAX reference of the same forward (eval mode)."""
    xt = jnp.transpose(x, (0, 2, 3, 1))                  # (N, H, W, C_in)
    h = jnp.einsum("nhwc,oc->nhwo", xt, w_conv1)
    h = jnp.where(h >= 0, h, slope * h)
    y = jnp.einsum("nhwc,oc->nhwo", h, w_conv2)
    mean = y.mean(-1, keepdims=True)
    var = ((y - mean) ** 2).mean(-1, keepdims=True)
    y_n = (y - mean) / jnp.sqrt(var + eps) * ln_gamma + ln_beta
    up = jnp.einsum("nhwc,oc->nhwo", xt, w_up)
    return jnp.transpose(y_n + up, (0, 3, 1, 2))


def _init_params(key, c_in, hidden, c_out):
    k1, k2, k3, k4, k5 = jax.random.split(key, 5)
    lim1 = 1.0 / (c_in ** 0.5)
    lim2 = 1.0 / (hidden ** 0.5)
    w_conv1 = jax.random.uniform(k1, (hidden, c_in), jnp.float32, -lim1, lim1)
    w_conv2 = jax.random.uniform(k2, (c_out, hidden), jnp.float32, -lim2, lim2)
    w_up = jax.random.uniform(k3, (c_out, c_in), jnp.float32, -lim1, lim1)
    ln_gamma = 1.0 + 0.1 * jax.random.normal(k4, (c_out,), jnp.float32)
    ln_beta = 0.1 * jax.random.normal(k5, (c_out,), jnp.float32)
    return w_conv1, w_conv2, w_up, ln_gamma, ln_beta


if __name__ == "__main__":
    key = jax.random.PRNGKey(0)
    k1, k2, k3, kp1, kp2 = jax.random.split(key, 5)

    # --- check 1: small shapes, f32 ---
    N, C_in, hidden, C_out, H, W = 2, 16, 32, 16, 8, 8
    x = jax.random.normal(k1, (N, C_in, H, W), jnp.float32)
    p = _init_params(kp1, C_in, hidden, C_out)
    out = jax.block_until_ready(feed_forward(x, *p))
    ref = _reference(x, *p)
    assert out.shape == (N, C_out, H, W)
    assert jnp.allclose(out, ref, atol=2e-4, rtol=2e-4), "mismatch vs reference (f32)"

    # --- check 2: odd spatial size (token/lane dim not a multiple of 8/128) ---
    x_odd = jax.random.normal(k2, (N, C_in, 9, 9), jnp.float32)
    out_odd = jax.block_until_ready(feed_forward(x_odd, *p))
    ref_odd = _reference(x_odd, *p)
    assert out_odd.shape == (N, C_out, 9, 9)
    assert jnp.allclose(out_odd, ref_odd, atol=2e-4, rtol=2e-4), "mismatch (odd spatial)"

    # --- check 3: forced token + hidden tiling (k-loop accumulator path) ---
    N3, C3_in, hid3, C3_out, H3, W3 = 2, 32, 256, 32, 16, 16
    x3 = jax.random.normal(k3, (N3, C3_in, H3, W3), jnp.float32)
    p3 = _init_params(kp2, C3_in, hid3, C3_out)
    out3 = jax.block_until_ready(
        feed_forward(x3, *p3, tile_tokens=128, tile_hidden=128))
    ref3 = _reference(x3, *p3)
    assert jnp.allclose(out3, ref3, atol=2e-4, rtol=2e-4), "mismatch (tiled path)"

    # --- check 4: bf16 MXU operands (f32 accumulation/LN), looser tolerance ---
    out_bf = jax.block_until_ready(feed_forward(x, *p, compute_dtype=jnp.bfloat16))
    assert jnp.allclose(out_bf, ref, atol=5e-2, rtol=5e-2), "mismatch (bf16 compute)"

    print("KERNEL_OK")
</pallas_src>

<mosaic_0001>
module attributes {stable_mosaic.version = 11 : i64} {
  func.func @_ff_kernel(%arg0: i32, %arg1: i32, %arg2: i32, %arg3: memref<1x16x64xf32, #tpu.memory_space<vmem>>, %arg4: memref<32x16xf32, #tpu.memory_space<vmem>>, %arg5: memref<16x32xf32, #tpu.memory_space<vmem>>, %arg6: memref<16x16xf32, #tpu.memory_space<vmem>>, %arg7: memref<16x1xf32, #tpu.memory_space<vmem>>, %arg8: memref<16x1xf32, #tpu.memory_space<vmem>>, %arg9: memref<1x16x64xf32, #tpu.memory_space<vmem>>, %arg10: memref<16x64xf32, #tpu.memory_space<vmem>>, %arg11: memref<16x64xf32, #tpu.memory_space<vmem>>) attributes {dimension_semantics = [#tpu.dimension_semantics<parallel>, #tpu.dimension_semantics<parallel>, #tpu.dimension_semantics<arbitrary>], iteration_bounds = array<i64: 2, 1, 1>, scalar_prefetch = 0 : i64, scratch_operands = 2 : i64, tpu.core_type = #tpu.core_type<tc>, window_params = [{transform_indices = @transform_0, window_bounds = array<i64: 1, 16, 64>}, {transform_indices = @transform_1, window_bounds = array<i64: 32, 16>}, {transform_indices = @transform_2, window_bounds = array<i64: 16, 32>}, {pipeline_mode = #tpu.pipeline_mode<synchronous>, transform_indices = @transform_3, window_bounds = array<i64: 16, 16>}, {pipeline_mode = #tpu.pipeline_mode<synchronous>, transform_indices = @transform_4, window_bounds = array<i64: 16, 1>}, {pipeline_mode = #tpu.pipeline_mode<synchronous>, transform_indices = @transform_5, window_bounds = array<i64: 16, 1>}, {transform_indices = @transform_6, window_bounds = array<i64: 1, 16, 64>}]} {
    %c0 = arith.constant 0 : index
    %c0_0 = arith.constant 0 : index
    %c0_1 = arith.constant 0 : index
    %0 = vector.load %arg3[%c0, %c0_0, %c0_1] : memref<1x16x64xf32, #tpu.memory_space<vmem>>, vector<1x16x64xf32>
    %1 = vector.shape_cast %0 : vector<1x16x64xf32> to vector<16x64xf32>
    %c0_2 = arith.constant 0 : index
    %c0_3 = arith.constant 0 : index
    %2 = vector.load %arg4[%c0_2, %c0_3] : memref<32x16xf32, #tpu.memory_space<vmem>>, vector<32x16xf32>
    %cst = arith.constant dense<0.000000e+00> : vector<32x64xf32>
    %3 = tpu.matmul %2, %1, %cst {dimension_numbers = #tpu.dot_dimension_numbers<[1], [0], [0], [1], [0, 0, 1, 1], [], []>} : vector<32x16xf32>, vector<16x64xf32>, vector<32x64xf32> -> vector<32x64xf32>
    %cst_4 = arith.constant 0.000000e+00 : f32
    %4 = vector.broadcast %cst_4 : f32 to vector<32x64xf32>
    %5 = arith.cmpf oge, %3, %4 : vector<32x64xf32>
    %cst_5 = arith.constant 0.00999999977 : f32
    %6 = vector.broadcast %cst_5 : f32 to vector<32x64xf32>
    %7 = arith.mulf %6, %3 : vector<32x64xf32>
    %8 = arith.select %5, %3, %7 : vector<32x64xi1>, vector<32x64xf32>
    %c0_6 = arith.constant 0 : index
    %c0_7 = arith.constant 0 : index
    %9 = vector.load %arg5[%c0_6, %c0_7] : memref<16x32xf32, #tpu.memory_space<vmem>>, vector<16x32xf32>
    %cst_8 = arith.constant dense<0.000000e+00> : vector<16x64xf32>
    %10 = tpu.matmul %9, %8, %cst_8 {dimension_numbers = #tpu.dot_dimension_numbers<[1], [0], [0], [1], [0, 0, 1, 1], [], []>} : vector<16x32xf32>, vector<32x64xf32>, vector<16x64xf32> -> vector<16x64xf32>
    %c0_i32 = arith.constant 0 : i32
    %11 = arith.cmpi eq, %arg2, %c0_i32 : i32
    %12 = arith.extui %11 : i1 to i32
    %c0_i32_9 = arith.constant 0 : i32
    %13 = arith.cmpi ne, %12, %c0_i32_9 : i32
    scf.if %13 {
      %c0_14 = arith.constant 0 : index
      %c0_15 = arith.constant 0 : index
      %20 = vector.load %arg10[%c0_14, %c0_15] : memref<16x64xf32, #tpu.memory_space<vmem>>, vector<16x64xf32>
      tpu.vector_store %arg10[%c0_14, %c0_15], %10 {strides = array<i32>} : memref<16x64xf32, #tpu.memory_space<vmem>>, vector<16x64xf32>,
      %c0_16 = arith.constant 0 : index
      %c0_17 = arith.constant 0 : index
      %21 = vector.load %arg6[%c0_16, %c0_17] : memref<16x16xf32, #tpu.memory_space<vmem>>, vector<16x16xf32>
      %cst_18 = arith.constant dense<0.000000e+00> : vector<16x64xf32>
      %22 = tpu.matmul %21, %1, %cst_18 {dimension_numbers = #tpu.dot_dimension_numbers<[1], [0], [0], [1], [0, 0, 1, 1], [], []>} : vector<16x16xf32>, vector<16x64xf32>, vector<16x64xf32> -> vector<16x64xf32>
      %c0_19 = arith.constant 0 : index
      %c0_20 = arith.constant 0 : index
      %23 = vector.load %arg11[%c0_19, %c0_20] : memref<16x64xf32, #tpu.memory_space<vmem>>, vector<16x64xf32>
      tpu.vector_store %arg11[%c0_19, %c0_20], %22 {strides = array<i32>} : memref<16x64xf32, #tpu.memory_space<vmem>>, vector<16x64xf32>,
    } else {
    }
    %c0_i32_10 = arith.constant 0 : i32
    %14 = arith.cmpi sgt, %arg2, %c0_i32_10 : i32
    %15 = arith.extui %14 : i1 to i32
    %c0_i32_11 = arith.constant 0 : i32
    %16 = arith.cmpi ne, %15, %c0_i32_11 : i32
    scf.if %16 {
      %c0_14 = arith.constant 0 : index
      %c0_15 = arith.constant 0 : index
      %20 = vector.load %arg10[%c0_14, %c0_15] : memref<16x64xf32, #tpu.memory_space<vmem>>, vector<16x64xf32>
      %21 = arith.addf %20, %10 : vector<16x64xf32>
      %c0_16 = arith.constant 0 : index
      %c0_17 = arith.constant 0 : index
      %22 = vector.load %arg10[%c0_16, %c0_17] : memref<16x64xf32, #tpu.memory_space<vmem>>, vector<16x64xf32>
      tpu.vector_store %arg10[%c0_16, %c0_17], %21 {strides = array<i32>} : memref<16x64xf32, #tpu.memory_space<vmem>>, vector<16x64xf32>,
    } else {
    }
    %c0_i32_12 = arith.constant 0 : i32
    %17 = arith.cmpi eq, %arg2, %c0_i32_12 : i32
    %18 = arith.extui %17 : i1 to i32
    %c0_i32_13 = arith.constant 0 : i32
    %19 = arith.cmpi ne, %18, %c0_i32_13 : i32
    scf.if %19 {
      %c0_14 = arith.constant 0 : index
      %c0_15 = arith.constant 0 : index
      %20 = vector.load %arg10[%c0_14, %c0_15] : memref<16x64xf32, #tpu.memory_space<vmem>>, vector<16x64xf32>
      %cst_16 = arith.constant dense<0.000000e+00> : vector<64xf32>
      %21 = vector.multi_reduction <add>, %20, %cst_16 [0] : vector<16x64xf32> to vector<64xf32>
      %22 = vector.shape_cast %21 : vector<64xf32> to vector<1x64xf32>
      %cst_17 = arith.constant 1.600000e+01 : f32
      %23 = vector.broadcast %cst_17 : f32 to vector<1x64xf32>
      %24 = arith.divf %22, %23 : vector<1x64xf32>
      %25 = vector.broadcast %24 : vector<1x64xf32> to vector<16x64xf32>
      %26 = arith.subf %20, %25 : vector<16x64xf32>
      %27 = arith.mulf %26, %26 : vector<16x64xf32>
      %cst_18 = arith.constant dense<0.000000e+00> : vector<64xf32>
      %28 = vector.multi_reduction <add>, %27, %cst_18 [0] : vector<16x64xf32> to vector<64xf32>
      %29 = vector.shape_cast %28 : vector<64xf32> to vector<1x64xf32>
      %cst_19 = arith.constant 1.600000e+01 : f32
      %30 = vector.broadcast %cst_19 : f32 to vector<1x64xf32>
      %31 = arith.divf %29, %30 : vector<1x64xf32>
      %32 = vector.broadcast %24 : vector<1x64xf32> to vector<16x64xf32>
      %33 = arith.subf %20, %32 : vector<16x64xf32>
      %cst_20 = arith.constant 9.99999974E-6 : f32
      %34 = vector.broadcast %cst_20 : f32 to vector<1x64xf32>
      %35 = arith.addf %31, %34 : vector<1x64xf32>
      %36 = math.rsqrt %35 : vector<1x64xf32>
      %37 = vector.broadcast %36 : vector<1x64xf32> to vector<16x64xf32>
      %38 = arith.mulf %33, %37 : vector<16x64xf32>
      %c0_21 = arith.constant 0 : index
      %c0_22 = arith.constant 0 : index
      %39 = vector.load %arg7[%c0_21, %c0_22] : memref<16x1xf32, #tpu.memory_space<vmem>>, vector<16x1xf32>
      %40 = vector.broadcast %39 : vector<16x1xf32> to vector<16x64xf32>
      %41 = arith.mulf %38, %40 : vector<16x64xf32>
      %c0_23 = arith.constant 0 : index
      %c0_24 = arith.constant 0 : index
      %42 = vector.load %arg8[%c0_23, %c0_24] : memref<16x1xf32, #tpu.memory_space<vmem>>, vector<16x1xf32>
      %43 = vector.broadcast %42 : vector<16x1xf32> to vector<16x64xf32>
      %44 = arith.addf %41, %43 : vector<16x64xf32>
      %c0_25 = arith.constant 0 : index
      %c0_26 = arith.constant 0 : index
      %45 = vector.load %arg11[%c0_25, %c0_26] : memref<16x64xf32, #tpu.memory_space<vmem>>, vector<16x64xf32>
      %46 = arith.addf %44, %45 : vector<16x64xf32>
      %c0_27 = arith.constant 0 : index
      %c0_28 = arith.constant 0 : index
      %c0_29 = arith.constant 0 : index
      %47 = vector.load %arg9[%c0_27, %c0_28, %c0_29] : memref<1x16x64xf32, #tpu.memory_space<vmem>>, vector<1x16x64xf32>
      %48 = vector.shape_cast %47 : vector<1x16x64xf32> to vector<16x64xf32>
      %49 = vector.shape_cast %46 : vector<16x64xf32> to vector<1x16x64xf32>
      tpu.vector_store %arg9[%c0_27, %c0_28, %c0_29], %49 {strides = array<i32>} : memref<1x16x64xf32, #tpu.memory_space<vmem>>, vector<1x16x64xf32>,
    } else {
    }
    return
  }
  func.func @transform_0(%arg0: i32, %arg1: i32, %arg2: i32) -> (i32, i32, i32) {
    %c0_i32 = arith.constant 0 : i32
    %c0_i32_0 = arith.constant 0 : i32
    return %arg0, %c0_i32, %arg1 : i32, i32, i32
  }
  func.func @transform_1(%arg0: i32, %arg1: i32, %arg2: i32) -> (i32, i32) {
    %c0_i32 = arith.constant 0 : i32
    %c0_i32_0 = arith.constant 0 : i32
    return %arg2, %c0_i32 : i32, i32
  }
  func.func @transform_2(%arg0: i32, %arg1: i32, %arg2: i32) -> (i32, i32) {
    %c0_i32 = arith.constant 0 : i32
    %c0_i32_0 = arith.constant 0 : i32
    return %c0_i32, %arg2 : i32, i32
  }
  func.func @transform_3(%arg0: i32, %arg1: i32, %arg2: i32) -> (i32, i32) {
    %c0_i32 = arith.constant 0 : i32
    %c0_i32_0 = arith.constant 0 : i32
    %c0_i32_1 = arith.constant 0 : i32
    return %c0_i32, %c0_i32_0 : i32, i32
  }
  func.func @transform_4(%arg0: i32, %arg1: i32, %arg2: i32) -> (i32, i32) {
    %c0_i32 = arith.constant 0 : i32
    %c0_i32_0 = arith.constant 0 : i32
    %c0_i32_1 = arith.constant 0 : i32
    return %c0_i32, %c0_i32_0 : i32, i32
  }
  func.func @transform_5(%arg0: i32, %arg1: i32, %arg2: i32) -> (i32, i32) {
    %c0_i32 = arith.constant 0 : i32
    %c0_i32_0 = arith.constant 0 : i32
    %c0_i32_1 = arith.constant 0 : i32
    return %c0_i32, %c0_i32_0 : i32, i32
  }
  func.func @transform_6(%arg0: i32, %arg1: i32, %arg2: i32) -> (i32, i32, i32) {
    %c0_i32 = arith.constant 0 : i32
    %c0_i32_0 = arith.constant 0 : i32
    return %arg0, %c0_i32, %arg1 : i32, i32, i32
  }
}

</mosaic_0001>

<llo_original>
// kernel: feed_forward.1
$region0: #{feed_forward.1}
  #allocation0 [shape = 'u32[]', space=smem, size = 0x4, offset = 0x4, fixed_abs, tag = 'smem constant byte address 0x4 - core index']
  #allocation1 [shape = 'u32[144,128]{1,0:T(1,128)}', space=vmem, size = 0x12000, scoped, tag = 'internal scratch']
  #allocation2 [shape = 'f32[16,64]{1,0:T(8,128)}', space=vmem, size = 0x2000, scoped, tag = 'scratch operand']
  #allocation3 [shape = 'f32[16,64]{1,0:T(8,128)}', space=vmem, size = 0x2000, scoped, tag = 'scratch operand']
  %s0 = inlined_call_operand.vmem [shape: f32[2,16,64], index: 0, kind: input, shape index: {}]
  %s1 = inlined_call_operand.vmem [shape: f32[32,16], index: 1, kind: input, shape index: {}]
  %s2 = inlined_call_operand.vmem [shape: f32[16,32], index: 2, kind: input, shape index: {}]
  %s3 = inlined_call_operand.vmem [shape: f32[16,16], index: 3, kind: input, shape index: {}]
  %s4 = inlined_call_operand.vmem [shape: f32[16,1], index: 4, kind: input, shape index: {}]
  %s5 = inlined_call_operand.vmem [shape: f32[16,1], index: 5, kind: input, shape index: {}]
  %s6 = inlined_call_operand.vmem [shape: f32[2,16,64], index: 6, kind: output, shape index: {}]
  %s7 = sld [smem:[#allocation0]]
  $region69: #{feed_forward.1} parent=0
    _
  %s9 = ssub.s32 1, %s7
  %s10 = scalar_select 0, %s9, %s7
  loop: start=0, step=1, limit=4
  $region2: #{feed_forward.1} parent=0 // loop_pre_header
    _
  $region3: #{feed_forward.1} parent=0 // loop_header
    %s12 = sphi 0, %s16
    %p13 = scmp.ge.s32.totalorder %s12, 4
    %s19 = sphi 0, %s38
    %s20 = sphi 0, %s34
    %s21 = sphi 0, %s30
    %s22 = sphi 0, %s19
    %s23 = sphi 0, %s20
    %s24 = sphi 0, %s21
    %s25 = sphi 0, %s22
    %s26 = sphi 0, %s23
    %s27 = sphi 0, %s24
    %s43 = sphi 0, %s45
    %s46 = sphi 0, %s43
    %s47 = sphi 0, %s46
    %s63 = sphi 0, %s47
    %s69 = sphi 0, %s71
    %s72 = sphi 0, %s69
    %s73 = sphi 0, %s72
    %s89 = sphi 0, %s73
    %s95 = sphi 0, %s97
    %s98 = sphi 0, %s95
    %s99 = sphi 0, %s98
    %s115 = sphi 0, %s99
    %s119 = sphi 0, %s119
    %s121 = sphi 0, %s119
    %s122 = sphi 0, %s121
    %s136 = sphi 0, %s122
    %s140 = sphi 0, %s140
    %s142 = sphi 0, %s140
    %s143 = sphi 0, %s142
    %s157 = sphi 0, %s143
    %s161 = sphi 0, %s161
    %s163 = sphi 0, %s161
    %s164 = sphi 0, %s163
    %s178 = sphi 0, %s164
    %s186 = sphi 0, %s188
    %s189 = sphi 0, %s186
    %s190 = sphi 0, %s189
    %s206 = sphi 0, %s190
  $region4: #{feed_forward.1} parent=0 // loop_header_branch
    %15 = sbr.rel (%p13) target = $region8
  $region5: #{feed_forward.1} parent=0 // loop_body
    %s17 = ssub.s32 %s12, 1
    %s18 = ssub.s32 %s12, 2
    %s28 = sadd.s32 1, %s21
    %p29 = scmp.ge.s32.totalorder %s28, 1
    %s30 = scalar_select %p29, 0, %s28
    %s31 = sadd.s32 1, %s20
    %s32 = scalar_select %p29, %s31, %s20
    %p33 = scmp.ge.s32.totalorder %s32, 1
    %s34 = scalar_select %p33, 0, %s32
    %s35 = sadd.s32 1, %s19
    %s36 = scalar_select %p33, %s35, %s19
    %p37 = scmp.ge.s32.totalorder %s36, 2
    %s38 = scalar_select %p37, 0, %s36
    %s39 = ssub.s32 %s19, %s38
    %s40 = ssub.s32 %s20, %s34
    %s41 = sor.u32 %s39, %s40
    %p42 = scmp.eq.s32.totalorder %s41, 0
    %s44 = sadd.s32 %s43, 1
    %s45 = scalar_select %p42, %s43, %s44
    %p48 = pneg %p42
    %p49 = scmp.eq.s32.totalorder %s12, 1
    %p50 = por %p48, %p49
    %p51 = scmp.ne.s32.totalorder %s43, %s46
    %p52 = scmp.eq.s32.totalorder %s12, 0
    %p53 = por %p51, %p52
    %p54 = scmp.ne.s32.totalorder %s43, %s46
    %p55 = scmp.eq.s32.totalorder %s17, 1
    %p56 = por %p54, %p55
    %p57 = scmp.ne.s32.totalorder %s46, %s47
    %p58 = scmp.eq.s32.totalorder %s17, 0
    %p59 = por %p57, %p58
    %p60 = scmp.ne.s32.totalorder %s46, %s47
    %p61 = scmp.eq.s32.totalorder %s18, 1
    %p62 = por %p60, %p61
    %p64 = scmp.ne.s32.totalorder %s47, %s63
    %p65 = scmp.eq.s32.totalorder %s18, 0
    %p66 = por %p64, %p65
    %s67 = ssub.s32 %s21, %s30
    %p68 = scmp.eq.s32.totalorder %s67, 0
    %s70 = sadd.s32 %s69, 1
    %s71 = scalar_select %p68, %s69, %s70
    %p74 = pneg %p68
    %p75 = scmp.eq.s32.totalorder %s12, 1
    %p76 = por %p74, %p75
    %p77 = scmp.ne.s32.totalorder %s69, %s72
    %p78 = scmp.eq.s32.totalorder %s12, 0
    %p79 = por %p77, %p78
    %p80 = scmp.ne.s32.totalorder %s69, %s72
    %p81 = scmp.eq.s32.totalorder %s17, 1
    %p82 = por %p80, %p81
    %p83 = scmp.ne.s32.totalorder %s72, %s73
    %p84 = scmp.eq.s32.totalorder %s17, 0
    %p85 = por %p83, %p84
    %p86 = scmp.ne.s32.totalorder %s72, %s73
    %p87 = scmp.eq.s32.totalorder %s18, 1
    %p88 = por %p86, %p87
    %p90 = scmp.ne.s32.totalorder %s73, %s89
    %p91 = scmp.eq.s32.totalorder %s18, 0
    %p92 = por %p90, %p91
    %s93 = ssub.s32 %s21, %s30
    %p94 = scmp.eq.s32.totalorder %s93, 0
    %s96 = sadd.s32 %s95, 1
    %s97 = scalar_select %p94, %s95, %s96
    %p100 = pneg %p94
    %p101 = scmp.eq.s32.totalorder %s12, 1
    %p102 = por %p100, %p101
    %p103 = scmp.ne.s32.totalorder %s95, %s98
    %p104 = scmp.eq.s32.totalorder %s12, 0
    %p105 = por %p103, %p104
    %p106 = scmp.ne.s32.totalorder %s95, %s98
    %p107 = scmp.eq.s32.totalorder %s17, 1
    %p108 = por %p106, %p107
    %p109 = scmp.ne.s32.totalorder %s98, %s99
    %p110 = scmp.eq.s32.totalorder %s17, 0
    %p111 = por %p109, %p110
    %p112 = scmp.ne.s32.totalorder %s98, %s99
    %p113 = scmp.eq.s32.totalorder %s18, 1
    %p114 = por %p112, %p113
    %p116 = scmp.ne.s32.totalorder %s99, %s115
    %p117 = scmp.eq.s32.totalorder %s18, 0
    %p118 = por %p116, %p117
    %s120 = sadd.s32 %s119, 1
    %p123 = scmp.eq.s32.totalorder %s12, 1
    %p124 = scmp.ne.s32.totalorder %s119, %s121
    %p125 = scmp.eq.s32.totalorder %s12, 0
    %p126 = por %p124, %p125
    %p127 = scmp.ne.s32.totalorder %s119, %s121
    %p128 = scmp.eq.s32.totalorder %s17, 1
    %p129 = por %p127, %p128
    %p130 = scmp.ne.s32.totalorder %s121, %s122
    %p131 = scmp.eq.s32.totalorder %s17, 0
    %p132 = por %p130, %p131
    %p133 = scmp.ne.s32.totalorder %s121, %s122
    %p134 = scmp.eq.s32.totalorder %s18, 1
    %p135 = por %p133, %p134
    %p137 = scmp.ne.s32.totalorder %s122, %s136
    %p138 = scmp.eq.s32.totalorder %s18, 0
    %p139 = por %p137, %p138
    %s141 = sadd.s32 %s140, 1
    %p144 = scmp.eq.s32.totalorder %s12, 1
    %p145 = scmp.ne.s32.totalorder %s140, %s142
    %p146 = scmp.eq.s32.totalorder %s12, 0
    %p147 = por %p145, %p146
    %p148 = scmp.ne.s32.totalorder %s140, %s142
    %p149 = scmp.eq.s32.totalorder %s17, 1
    %p150 = por %p148, %p149
    %p151 = scmp.ne.s32.totalorder %s142, %s143
    %p152 = scmp.eq.s32.totalorder %s17, 0
    %p153 = por %p151, %p152
    %p154 = scmp.ne.s32.totalorder %s142, %s143
    %p155 = scmp.eq.s32.totalorder %s18, 1
    %p156 = por %p154, %p155
    %p158 = scmp.ne.s32.totalorder %s143, %s157
    %p159 = scmp.eq.s32.totalorder %s18, 0
    %p160 = por %p158, %p159
    %s162 = sadd.s32 %s161, 1
    %p165 = scmp.eq.s32.totalorder %s12, 1
    %p166 = scmp.ne.s32.totalorder %s161, %s163
    %p167 = scmp.eq.s32.totalorder %s12, 0
    %p168 = por %p166, %p167
    %p169 = scmp.ne.s32.totalorder %s161, %s163
    %p170 = scmp.eq.s32.totalorder %s17, 1
    %p171 = por %p169, %p170
    %p172 = scmp.ne.s32.totalorder %s163, %s164
    %p173 = scmp.eq.s32.totalorder %s17, 0
    %p174 = por %p172, %p173
    %p175 = scmp.ne.s32.totalorder %s163, %s164
    %p176 = scmp.eq.s32.totalorder %s18, 1
    %p177 = por %p175, %p176
    %p179 = scmp.ne.s32.totalorder %s164, %s178
    %p180 = scmp.eq.s32.totalorder %s18, 0
    %p181 = por %p179, %p180
    %s182 = ssub.s32 %s19, %s38
    %s183 = ssub.s32 %s20, %s34
    %s184 = sor.u32 %s182, %s183
    %p185 = scmp.eq.s32.totalorder %s184, 0
    %s187 = sadd.s32 %s186, 1
    %s188 = scalar_select %p185, %s186, %s187
    %p191 = pneg %p185
    %p192 = scmp.eq.s32.totalorder %s12, 1
    %p193 = por %p191, %p192
    %p194 = scmp.ne.s32.totalorder %s186, %s189
    %p195 = scmp.eq.s32.totalorder %s12, 0
    %p196 = por %p194, %p195
    %p197 = scmp.ne.s32.totalorder %s186, %s189
    %p198 = scmp.eq.s32.totalorder %s17, 1
    %p199 = por %p197, %p198
    %p200 = scmp.ne.s32.totalorder %s189, %s190
    %p201 = scmp.eq.s32.totalorder %s17, 0
    %p202 = por %p200, %p201
    %p203 = scmp.ne.s32.totalorder %s189, %s190
    %p204 = scmp.eq.s32.totalorder %s18, 1
    %p205 = por %p203, %p204
    %p207 = scmp.ne.s32.totalorder %s190, %s206
    %p208 = scmp.eq.s32.totalorder %s18, 0
    %p209 = por %p207, %p208
    %p210 = scmp.le.s32.totalorder 1, %s12
    %p211 = scmp.lt.s32.totalorder %s12, 3
    %p212 = pnand %p210, %p211
    %p213 = pneg %p212
    // Predicated region
    $region9: #{feed_forward.1} parent=5 // pred_check
      _
    $region10: #{feed_forward.1} parent=5 // pred_check_branch
      %215 = sbr.rel (%p212) target = $region12
    $region11: #{feed_forward.1} parent=5 // pred_region
      %s216 = ssub.s32 %s12, 1
      // Predicated region
      $region13: #{feed_forward.1} parent=11 // pred_check
        %p217 = pneg %p85
      $region14: #{feed_forward.1} parent=11 // pred_check_branch
        %219 = sbr.rel (%p217) target = $region16
      $region15: #{feed_forward.1} parent=11 // pred_region
        %s220 = smul.u32 4, %s24
        %p221 = scmp.lt.s32.totalorder %s220, 3
        %s222 = scalar_select %p221, %s220, 3
        %s223 = smul.addr %s222, 8
        %s224 = scalar_lea.vmem %s1, %s223
        %s225 = smul.u32 4, %s24
      $region16: #{feed_forward.1} parent=11 // pred_fallthru
        _
      // Predicated region
      $region17: #{feed_forward.1} parent=11 // pred_check
        %p226 = pneg %p111
      $region18: #{feed_forward.1} parent=11 // pred_check_branch
        %228 = sbr.rel (%p226) target = $region20
      $region19: #{feed_forward.1} parent=11 // pred_region
        %p229 = scmp.lt.s32.totalorder %s24, 0
        %s230 = scalar_select %p229, %s24, 0
        %s231 = smul.addr %s230, 8
        %s232 = scalar_lea.vmem %s2, %s231
      $region20: #{feed_forward.1} parent=11 // pred_fallthru
        _
      // Predicated region
      $region21: #{feed_forward.1} parent=11 // pred_check
        %p233 = pneg %p132
      $region22: #{feed_forward.1} parent=11 // pred_check_branch
        %235 = sbr.rel (%p233) target = $region24
      $region23: #{feed_forward.1} parent=11 // pred_region
        _
      $region24: #{feed_forward.1} parent=11 // pred_fallthru
        _
      // Predicated region
      $region25: #{feed_forward.1} parent=11 // pred_check
        %p236 = pneg %p153
      $region26: #{feed_forward.1} parent=11 // pred_check_branch
        %238 = sbr.rel (%p236) target = $region28
      $region27: #{feed_forward.1} parent=11 // pred_region
        _
      $region28: #{feed_forward.1} parent=11 // pred_fallthru
        _
      // Predicated region
      $region29: #{feed_forward.1} parent=11 // pred_check
        %p239 = pneg %p174
      $region30: #{feed_forward.1} parent=11 // pred_check_branch
        %241 = sbr.rel (%p239) target = $region32
      $region31: #{feed_forward.1} parent=11 // pred_region
        _
      $region32: #{feed_forward.1} parent=11 // pred_fallthru
        _
    $region12: #{feed_forward.1} parent=5 // pred_fallthru
      _
    %p242 = scmp.lt.s32.totalorder %s12, 2
    // Predicated region
    $region33: #{feed_forward.1} parent=5 // pred_check
      %p243 = pneg %p242
    $region34: #{feed_forward.1} parent=5 // pred_check_branch
      %245 = sbr.rel (%p243) target = $region36
    $region35: #{feed_forward.1} parent=5 // pred_region
      // Predicated region
      $region37: #{feed_forward.1} parent=35 // pred_check
        %p246 = pneg %p53
      $region38: #{feed_forward.1} parent=35 // pred_check_branch
        %248 = sbr.rel (%p246) target = $region40
      $region39: #{feed_forward.1} parent=35 // pred_region
        %p249 = scmp.lt.s32.totalorder %s19, 1
        %s250 = scalar_select %p249, %s19, 1
        %p251 = scmp.lt.s32.totalorder %s20, 0
        %s252 = scalar_select %p251, %s20, 0
        %s253 = smul.addr %s250, 2
        %s254 = sadd.s32 %s252, %s253
        %s255 = smul.addr %s254, 8
        %s256 = scalar_lea.vmem %s0, %s255
      $region40: #{feed_forward.1} parent=35 // pred_fallthru
        _
    $region36: #{feed_forward.1} parent=5 // pred_fallthru
      _
    %p257 = scmp.le.s32.totalorder 1, %s12
    %p258 = scmp.lt.s32.totalorder %s12, 3
    %p259 = pnand %p257, %p258
    %p260 = pneg %p259
    // Predicated region
    $region41: #{feed_forward.1} parent=5 // pred_check
      _
    $region42: #{feed_forward.1} parent=5 // pred_check_branch
      %262 = sbr.rel (%p259) target = $region44
    $region43: #{feed_forward.1} parent=5 // pred_region
      %s263 = ssub.s32 %s12, 1
      %p264 = scmp.lt.s32.totalorder %s22, 1
      %s265 = scalar_select %p264, %s22, 1
      %p266 = scmp.lt.s32.totalorder %s23, 0
      %s267 = scalar_select %p266, %s23, 0
      %s268 = smul.addr %s265, 2
      %s269 = sadd.s32 %s267, %s268
      %s270 = smul.addr %s269, 8
      %s271 = scalar_lea.vmem %s0, %s270
      %p272 = pneg %p59
      %p273 = pneg %p56
      %s274 = smul.u32 4, %s24
      %p275 = scmp.lt.s32.totalorder %s274, 3
      %s276 = scalar_select %p275, %s274, 3
      %s277 = smul.addr %s276, 8
      %s278 = scalar_lea.vmem %s1, %s277
      %p279 = pneg %p85
      %p280 = pneg %p82
      %p281 = scmp.lt.s32.totalorder %s24, 0
      %s282 = scalar_select %p281, %s24, 0
      %s283 = smul.addr %s282, 8
      %s284 = scalar_lea.vmem %s2, %s283
      %p285 = pneg %p111
      %p286 = pneg %p108
      %p287 = pneg %p132
      %p288 = pneg %p129
      %p289 = pneg %p153
      %p290 = pneg %p150
      %p291 = pneg %p174
      %p292 = pneg %p171
      %p293 = pneg %p202
      %p294 = pneg %p199
      %p295 = scmp.lt.s32.totalorder %s22, 1
      %s296 = scalar_select %p295, %s22, 1
      %p297 = scmp.lt.s32.totalorder %s23, 0
      %s298 = scalar_select %p297, %s23, 0
      %s299 = smul.addr %s296, 2
      %s300 = sadd.s32 %s298, %s299
      %s301 = smul.addr %s300, 8
      %s302 = scalar_lea.vmem %s6, %s301
      %p303 = scmp.lt.s32.totalorder %s22, 1
      %s304 = scalar_select %p303, %s22, 1
      %p305 = scmp.lt.s32.totalorder %s23, 0
      %s306 = scalar_select %p305, %s23, 0
      %s307 = smul.addr %s304, 2
      %s308 = sadd.s32 %s306, %s307
      %s309 = smul.addr %s308, 8
      %s310 = scalar_lea.vmem %s0, %s309
      %s311 = smul.u32 4, %s24
      %p312 = scmp.lt.s32.totalorder %s311, 3
      %s313 = scalar_select %p312, %s311, 3
      %s314 = smul.addr %s313, 8
      %s315 = scalar_lea.vmem %s1, %s314
      %s316 = smul.u32 4, %s24
      %p317 = scmp.lt.s32.totalorder %s24, 0
      %s318 = scalar_select %p317, %s24, 0
      %s319 = smul.addr %s318, 8
      %s320 = scalar_lea.vmem %s2, %s319
      %p321 = scmp.lt.s32.totalorder %s22, 1
      %s322 = scalar_select %p321, %s22, 1
      %p323 = scmp.lt.s32.totalorder %s23, 0
      %s324 = scalar_select %p323, %s23, 0
      %s325 = smul.addr %s322, 2
      %s326 = sadd.s32 %s324, %s325
      %s327 = smul.addr %s326, 8
      %s328 = scalar_lea.vmem %s6, %s327
      %v329 = vld [vmem:[%s310] sm:$0xff]
      %v330 = vld [vmem:[%s310 + $0x8] sm:$0xff]
      %v331 = vld [vmem:[%s315] sm:$0xff]
      %v332 = vld [vmem:[%s315 + $0x8] sm:$0xff]
      %v333 = vld [vmem:[%s315 + $0x10] sm:$0xff]
      %v334 = vld [vmem:[%s315 + $0x18] sm:$0xff]
      %vm335 = vcmask 130048
      %v337 = vsel %vm335, %v331, 0
      %v340 = vsel %vm335, %v332, 0
      %v343 = vsel %vm335, %v333, 0
      %v346 = vsel %vm335, %v334, 0
      %348 = vmatprep.subr.mxu0 0.0
      %349 = vmatpush1.msra.mxu0 %v329
      %350 = vmatprep.subr.mxu0 0.0
      %351 = vmatpush1.msra.mxu0 %v330
      %352 = vmatprep.subr.mxu0 0.0
      %353 = vmatpush1.msra.mxu0 0.0
      %354 = vmatprep.subr.mxu0 0.0
      %355 = vmatpush1.msra.mxu0 0.0
      %356 = vmatprep.subr.mxu0 0.0
      %357 = vmatpush1.msra.mxu0 0.0
      %358 = vmatprep.subr.mxu0 0.0
      %359 = vmatpush1.msra.mxu0 0.0
      %360 = vmatprep.subr.mxu0 0.0
      %361 = vmatpush1.msra.mxu0 0.0
      %362 = vmatprep.subr.mxu0 0.0
      %363 = vmatpush1.msra.mxu0 0.0
      %364 = vmatprep.subr.mxu0 0.0
      %365 = vmatpush1.msra.mxu0 0.0
      %366 = vmatprep.subr.mxu0 0.0
      %367 = vmatpush1.msra.mxu0 0.0
      %368 = vmatprep.subr.mxu0 0.0
      %369 = vmatpush1.msra.mxu0 0.0
      %370 = vmatprep.subr.mxu0 0.0
      %371 = vmatpush1.msra.mxu0 0.0
      %372 = vmatprep.subr.mxu0 0.0
      %373 = vmatpush1.msra.mxu0 0.0
      %374 = vmatprep.subr.mxu0 0.0
      %375 = vmatpush1.msra.mxu0 0.0
      %376 = vmatprep.subr.mxu0 0.0
      %377 = vmatpush1.msra.mxu0 0.0
      %378 = vmatprep.subr.mxu0 0.0
      %379 = vmatpush1.msra.mxu0 0.0
      %380 = vmatprep.subr.mxu0 0.0
      %381 = vmatpush1.msra.mxu0 0.0
      %382 = vmatprep.subr.mxu0 0.0
      %383 = vmatpush1.msra.mxu0 0.0
      %384 = vmatprep.subr.mxu0 0.0
      %385 = vmatpush1.msra.mxu0 0.0
      %386 = vmatprep.subr.mxu0 0.0
      %387 = vmatpush1.msra.mxu0 0.0
      %388 = vmatprep.subr.mxu0 0.0
      %389 = vmatpush1.msra.mxu0 0.0
      %390 = vmatprep.subr.mxu0 0.0
      %391 = vmatpush1.msra.mxu0 0.0
      %392 = vmatprep.subr.mxu0 0.0
      %393 = vmatpush1.msra.mxu0 0.0
      %394 = vmatprep.subr.mxu0 0.0
      %395 = vmatpush1.msra.mxu0 0.0
      %396 = vmatprep.subr.mxu0 0.0
      %397 = vmatpush1.msra.mxu0 0.0
      %398 = vmatprep.subr.mxu0 0.0
      %399 = vmatpush1.msra.mxu0 0.0
      %400 = vmatprep.subr.mxu0 0.0
      %401 = vmatpush1.msra.mxu0 0.0
      %402 = vmatprep.subr.mxu0 0.0
      %403 = vmatpush1.msra.mxu0 0.0
      %404 = vmatprep.subr.mxu0 0.0
      %405 = vmatpush1.msra.mxu0 0.0
      %406 = vmatprep.subr.mxu0 0.0
      %407 = vmatpush1.msra.mxu0 0.0
      %408 = vmatprep.subr.mxu0 0.0
      %409 = vmatpush1.msra.mxu0 0.0
      %410 = vmatprep.subr.mxu0 0.0
      %411 = vmatpush1.msra.mxu0 0.0
      %412 = vmatprep.mubr.f32.mxu0 0.0
      %413 = vmatmul.mubr.f32.gmra.mrb[0].mxu0 %v337
      %v414 = vpop.f32.mrb[0].mxu0
      %v415 = vadd.f32 0.0, %v414
      %v416 = vpop.f32.mrb[0].mxu0
      %417 = vmatprep.mubr.f32.mxu0 0.0
      %418 = vmatmul.mubr.f32.gmra.mrb[0].mxu0 %v340
      %v419 = vpop.f32.mrb[0].mxu0
      %v420 = vadd.f32 0.0, %v419
      %v421 = vpop.f32.mrb[0].mxu0
      %422 = vmatprep.mubr.f32.mxu0 0.0
      %423 = vmatmul.mubr.f32.gmra.mrb[0].mxu0 %v343
      %v424 = vpop.f32.mrb[0].mxu0
      %v425 = vadd.f32 0.0, %v424
      %v426 = vpop.f32.mrb[0].mxu0
      %427 = vmatprep.mubr.f32.mxu0 0.0
      %428 = vmatmul.mubr.f32.gmra.mrb[0].mxu0 %v346
      %v429 = vpop.f32.mrb[0].mxu0
      %v430 = vadd.f32 0.0, %v429
      %v431 = vpop.f32.mrb[0].mxu0
      %432 = vdwg.mxu0
      %vm433 = vcmp.ge.f32.partialorder %v415, 0.0
      %vm434 = vcmp.ge.f32.partialorder %v420, 0.0
      %vm435 = vcmp.ge.f32.partialorder %v425, 0.0
      %vm436 = vcmp.ge.f32.partialorder %v430, 0.0
      %v437 = vmul.f32 %v415, 0.01
      %v438 = vmul.f32 %v420, 0.01
      %v439 = vmul.f32 %v425, 0.01
      %v440 = vmul.f32 %v430, 0.01
      %v441 = vsel %vm433, %v415, %v437
      %v442 = vsel %vm434, %v420, %v438
      %v443 = vsel %vm435, %v425, %v439
      %v444 = vsel %vm436, %v430, %v440
      %v445 = vld [vmem:[%s320] sm:$0xff]
      %v446 = vld [vmem:[%s320 + $0x8] sm:$0xff]
      %vm447 = vcmask 261120
      %v449 = vsel %vm447, %v445, 0
      %v452 = vsel %vm447, %v446, 0
      %454 = vmatprep.subr.mxu0 0.0
      %455 = vmatpush1.msra.mxu0 %v441
      %456 = vmatprep.subr.mxu0 0.0
      %457 = vmatpush1.msra.mxu0 %v442
      %458 = vmatprep.subr.mxu0 0.0
      %459 = vmatpush1.msra.mxu0 %v443
      %460 = vmatprep.subr.mxu0 0.0
      %461 = vmatpush1.msra.mxu0 %v444
      %462 = vmatprep.subr.mxu0 0.0
      %463 = vmatpush1.msra.mxu0 0.0
      %464 = vmatprep.subr.mxu0 0.0
      %465 = vmatpush1.msra.mxu0 0.0
      %466 = vmatprep.subr.mxu0 0.0
      %467 = vmatpush1.msra.mxu0 0.0
      %468 = vmatprep.subr.mxu0 0.0
      %469 = vmatpush1.msra.mxu0 0.0
      %470 = vmatprep.subr.mxu0 0.0
      %471 = vmatpush1.msra.mxu0 0.0
      %472 = vmatprep.subr.mxu0 0.0
      %473 = vmatpush1.msra.mxu0 0.0
      %474 = vmatprep.subr.mxu0 0.0
      %475 = vmatpush1.msra.mxu0 0.0
      %476 = vmatprep.subr.mxu0 0.0
      %477 = vmatpush1.msra.mxu0 0.0
      %478 = vmatprep.subr.mxu0 0.0
      %479 = vmatpush1.msra.mxu0 0.0
      %480 = vmatprep.subr.mxu0 0.0
      %481 = vmatpush1.msra.mxu0 0.0
      %482 = vmatprep.subr.mxu0 0.0
      %483 = vmatpush1.msra.mxu0 0.0
      %484 = vmatprep.subr.mxu0 0.0
      %485 = vmatpush1.msra.mxu0 0.0
      %486 = vmatprep.subr.mxu0 0.0
      %487 = vmatpush1.msra.mxu0 0.0
      %488 = vmatprep.subr.mxu0 0.0
      %489 = vmatpush1.msra.mxu0 0.0
      %490 = vmatprep.subr.mxu0 0.0
      %491 = vmatpush1.msra.mxu0 0.0
      %492 = vmatprep.subr.mxu0 0.0
      %493 = vmatpush1.msra.mxu0 0.0
      %494 = vmatprep.subr.mxu0 0.0
      %495 = vmatpush1.msra.mxu0 0.0
      %496 = vmatprep.subr.mxu0 0.0
      %497 = vmatpush1.msra.mxu0 0.0
      %498 = vmatprep.subr.mxu0 0.0
      %499 = vmatpush1.msra.mxu0 0.0
      %500 = vmatprep.subr.mxu0 0.0
      %501 = vmatpush1.msra.mxu0 0.0
      %502 = vmatprep.subr.mxu0 0.0
      %503 = vmatpush1.msra.mxu0 0.0
      %504 = vmatprep.subr.mxu0 0.0
      %505 = vmatpush1.msra.mxu0 0.0
      %506 = vmatprep.subr.mxu0 0.0
      %507 = vmatpush1.msra.mxu0 0.0
      %508 = vmatprep.subr.mxu0 0.0
      %509 = vmatpush1.msra.mxu0 0.0
      %510 = vmatprep.subr.mxu0 0.0
      %511 = vmatpush1.msra.mxu0 0.0
      %512 = vmatprep.subr.mxu0 0.0
      %513 = vmatpush1.msra.mxu0 0.0
      %514 = vmatprep.subr.mxu0 0.0
      %515 = vmatpush1.msra.mxu0 0.0
      %516 = vmatprep.subr.mxu0 0.0
      %517 = vmatpush1.msra.mxu0 0.0
      %518 = vmatprep.mubr.f32.mxu0 0.0
      %519 = vmatmul.mubr.f32.gmra.mrb[0].mxu0 %v449
      %v520 = vpop.f32.mrb[0].mxu0
      %v521 = vadd.f32 0.0, %v520
      %v522 = vpop.f32.mrb[0].mxu0
      %523 = vmatprep.mubr.f32.mxu0 0.0
      %524 = vmatmul.mubr.f32.gmra.mrb[0].mxu0 %v452
      %v525 = vpop.f32.mrb[0].mxu0
      %v526 = vadd.f32 0.0, %v525
      %v527 = vpop.f32.mrb[0].mxu0
      %528 = vdwg.mxu0
      %p529 = scmp.eq.s32.totalorder %s24, 0
      // Predicated region
      $region45: #{feed_forward.1} parent=43 // pred_check
        %p530 = pneg %p529
      $region46: #{feed_forward.1} parent=43 // pred_check_branch
        %532 = sbr.rel (%p530) target = $region48
      $region47: #{feed_forward.1} parent=43 // pred_region
        %vm533 = vcmask 523264
        %534 = vst.msk [vmem:[#allocation2] sm:$0xff] %vm533, %v521
        %535 = vst.msk [vmem:[#allocation2 + $0x8] sm:$0xff] %vm533, %v526
        %v536 = vld [vmem:[%s3] sm:$0xff]
        %v537 = vld [vmem:[%s3 + $0x8] sm:$0xff]
        %v539 = vsel %vm335, %v536, 0
        %v542 = vsel %vm335, %v537, 0
        %544 = vmatprep.subr.mxu0 0.0
        %545 = vmatpush1.msra.mxu0 %v329
        %546 = vmatprep.subr.mxu0 0.0
        %547 = vmatpush1.msra.mxu0 %v330
        %548 = vmatprep.subr.mxu0 0.0
        %549 = vmatpush1.msra.mxu0 0.0
        %550 = vmatprep.subr.mxu0 0.0
        %551 = vmatpush1.msra.mxu0 0.0
        %552 = vmatprep.subr.mxu0 0.0
        %553 = vmatpush1.msra.mxu0 0.0
        %554 = vmatprep.subr.mxu0 0.0
        %555 = vmatpush1.msra.mxu0 0.0
        %556 = vmatprep.subr.mxu0 0.0
        %557 = vmatpush1.msra.mxu0 0.0
        %558 = vmatprep.subr.mxu0 0.0
        %559 = vmatpush1.msra.mxu0 0.0
        %560 = vmatprep.subr.mxu0 0.0
        %561 = vmatpush1.msra.mxu0 0.0
        %562 = vmatprep.subr.mxu0 0.0
        %563 = vmatpush1.msra.mxu0 0.0
        %564 = vmatprep.subr.mxu0 0.0
        %565 = vmatpush1.msra.mxu0 0.0
        %566 = vmatprep.subr.mxu0 0.0
        %567 = vmatpush1.msra.mxu0 0.0
        %568 = vmatprep.subr.mxu0 0.0
        %569 = vmatpush1.msra.mxu0 0.0
        %570 = vmatprep.subr.mxu0 0.0
        %571 = vmatpush1.msra.mxu0 0.0
        %572 = vmatprep.subr.mxu0 0.0
        %573 = vmatpush1.msra.mxu0 0.0
        %574 = vmatprep.subr.mxu0 0.0
        %575 = vmatpush1.msra.mxu0 0.0
        %576 = vmatprep.subr.mxu0 0.0
        %577 = vmatpush1.msra.mxu0 0.0
        %578 = vmatprep.subr.mxu0 0.0
        %579 = vmatpush1.msra.mxu0 0.0
        %580 = vmatprep.subr.mxu0 0.0
        %581 = vmatpush1.msra.mxu0 0.0
        %582 = vmatprep.subr.mxu0 0.0
        %583 = vmatpush1.msra.mxu0 0.0
        %584 = vmatprep.subr.mxu0 0.0
        %585 = vmatpush1.msra.mxu0 0.0
        %586 = vmatprep.subr.mxu0 0.0
        %587 = vmatpush1.msra.mxu0 0.0
        %588 = vmatprep.subr.mxu0 0.0
        %589 = vmatpush1.msra.mxu0 0.0
        %590 = vmatprep.subr.mxu0 0.0
        %591 = vmatpush1.msra.mxu0 0.0
        %592 = vmatprep.subr.mxu0 0.0
        %593 = vmatpush1.msra.mxu0 0.0
        %594 = vmatprep.subr.mxu0 0.0
        %595 = vmatpush1.msra.mxu0 0.0
        %596 = vmatprep.subr.mxu0 0.0
        %597 = vmatpush1.msra.mxu0 0.0
        %598 = vmatprep.subr.mxu0 0.0
        %599 = vmatpush1.msra.mxu0 0.0
        %600 = vmatprep.subr.mxu0 0.0
        %601 = vmatpush1.msra.mxu0 0.0
        %602 = vmatprep.subr.mxu0 0.0
        %603 = vmatpush1.msra.mxu0 0.0
        %604 = vmatprep.subr.mxu0 0.0
        %605 = vmatpush1.msra.mxu0 0.0
        %606 = vmatprep.subr.mxu0 0.0
        %607 = vmatpush1.msra.mxu0 0.0
        %608 = vmatprep.mubr.f32.mxu0 0.0
        %609 = vmatmul.mubr.f32.gmra.mrb[0].mxu0 %v539
        %v610 = vpop.f32.mrb[0].mxu0
        %v611 = vadd.f32 0.0, %v610
        %v612 = vpop.f32.mrb[0].mxu0
        %613 = vmatprep.mubr.f32.mxu0 0.0
        %614 = vmatmul.mubr.f32.gmra.mrb[0].mxu0 %v542
        %v615 = vpop.f32.mrb[0].mxu0
        %v616 = vadd.f32 0.0, %v615
        %v617 = vpop.f32.mrb[0].mxu0
        %618 = vdwg.mxu0
        %619 = vst.msk [vmem:[#allocation3] sm:$0xff] %vm533, %v611
        %620 = vst.msk [vmem:[#allocation3 + $0x8] sm:$0xff] %vm533, %v616
      $region48: #{feed_forward.1} parent=43 // pred_fallthru
        _
      %p621 = scmp.gt.s32.totalorder %s24, 0
      // Predicated region
      $region49: #{feed_forward.1} parent=43 // pred_check
        %p622 = pneg %p621
      $region50: #{feed_forward.1} parent=43 // pred_check_branch
        %624 = sbr.rel (%p622) target = $region52
      $region51: #{feed_forward.1} parent=43 // pred_region
        %v625 = vld [vmem:[#allocation2] sm:$0xff]
        %v626 = vld [vmem:[#allocation2 + $0x8] sm:$0xff]
        %v627 = vadd.f32 %v625, %v521
        %v628 = vadd.f32 %v626, %v526
        %vm629 = vcmask 523264
        %630 = vst.msk [vmem:[#allocation2] sm:$0xff] %vm629, %v627
        %631 = vst.msk [vmem:[#allocation2 + $0x8] sm:$0xff] %vm629, %v628
      $region52: #{feed_forward.1} parent=43 // pred_fallthru
        _
      // Predicated region
      $region53: #{feed_forward.1} parent=43 // pred_check
        %p632 = pneg %p529
      $region54: #{feed_forward.1} parent=43 // pred_check_branch
        %634 = sbr.rel (%p632) target = $region56
      $region55: #{feed_forward.1} parent=43 // pred_region
        %v635 = vld [vmem:[#allocation2] sm:$0xff]
        %v636 = vld [vmem:[#allocation2 + $0x8] sm:$0xff]
        %vm637 = vcmask 523264
        %v638 = vsel %vm637, %v635, 0.0
        %v639 = vsel %vm637, %v636, 0.0
        %v640 = vadd.f32 %v638, %v639
        %v641 = vrot.slane %v640, 4
        %v642 = vadd.f32 %v640, %v641
        %v643 = vrot.slane %v642, 2
        %v644 = vadd.f32 %v642, %v643
        %v645 = vrot.slane %v644, 1
        %v646 = vadd.f32 %v644, %v645
        %v647 = vrcp.pop 16.0
        %v648 = vmul.f32 %v646, %v647
        %v649 = vsub.f32 %v635, %v648
        %v650 = vsub.f32 %v636, %v648
        %v651 = vmul.f32 %v649, %v649
        %v652 = vmul.f32 %v650, %v650
        %v653 = vsel %vm637, %v651, 0.0
        %v654 = vsel %vm637, %v652, 0.0
        %v655 = vadd.f32 %v653, %v654
        %v656 = vrot.slane %v655, 4
        %v657 = vadd.f32 %v655, %v656
        %v658 = vrot.slane %v657, 2
        %v659 = vadd.f32 %v657, %v658
        %v660 = vrot.slane %v659, 1
        %v661 = vadd.f32 %v659, %v660
        %v662 = vmul.f32 %v661, %v647
        %v663 = vadd.f32 %v662, 1e-05
        %v664 = vrsqrt.pop %v663
        %v665 = vmul.f32 %v649, %v664
        %v666 = vmul.f32 %v650, %v664
        %v667 = vld [vmem:[%s4] sm:$0xff]
        %v668 = vld [vmem:[%s4 + $0x8] sm:$0xff]
        %670 = vset.pattern.permute.xlu0 0
        %671 = vperm.xlu0 %670, %v667
        %v672 = vpop.permute.xlu0 %671
        %675 = vset.pattern.permute.xlu0 0
        %676 = vperm.xlu0 %675, %v668
        %v677 = vpop.permute.xlu0 %676
        %v679 = vmul.f32 %v665, %v672
        %v680 = vmul.f32 %v666, %v677
        %v681 = vld [vmem:[%s5] sm:$0xff]
        %v682 = vld [vmem:[%s5 + $0x8] sm:$0xff]
        %684 = vset.pattern.permute.xlu0 0
        %685 = vperm.xlu0 %684, %v681
        %v686 = vpop.permute.xlu0 %685
        %689 = vset.pattern.permute.xlu0 0
        %690 = vperm.xlu0 %689, %v682
        %v691 = vpop.permute.xlu0 %690
        %v693 = vadd.f32 %v679, %v686
        %v694 = vadd.f32 %v680, %v691
        %v695 = vld [vmem:[#allocation3] sm:$0xff]
        %v696 = vld [vmem:[#allocation3 + $0x8] sm:$0xff]
        %v697 = vadd.f32 %v693, %v695
        %v698 = vadd.f32 %v694, %v696
        %699 = vst.msk [vmem:[%s328] sm:$0xff] %vm637, %v697
        %700 = vst.msk [vmem:[%s328 + $0x8] sm:$0xff] %vm637, %v698
      $region56: #{feed_forward.1} parent=43 // pred_fallthru
        _
      %p701 = scmp.lt.s32.totalorder %s22, 1
      %s702 = scalar_select %p701, %s22, 1
      %p703 = scmp.lt.s32.totalorder %s23, 0
      %s704 = scalar_select %p703, %s23, 0
      %s705 = smul.addr %s702, 2
      %s706 = sadd.s32 %s704, %s705
      %s707 = smul.addr %s706, 8
      %s708 = scalar_lea.vmem %s6, %s707
      // Predicated region
      $region57: #{feed_forward.1} parent=43 // pred_check
        %p709 = pneg %p199
      $region58: #{feed_forward.1} parent=43 // pred_check_branch
        %711 = sbr.rel (%p709) target = $region60
      $region59: #{feed_forward.1} parent=43 // pred_region
        _
      $region60: #{feed_forward.1} parent=43 // pred_fallthru
        _
    $region44: #{feed_forward.1} parent=5 // pred_fallthru
      _
    %p712 = scmp.le.s32.totalorder 2, %s12
    // Predicated region
    $region61: #{feed_forward.1} parent=5 // pred_check
      %p713 = pneg %p712
    $region62: #{feed_forward.1} parent=5 // pred_check_branch
      %715 = sbr.rel (%p713) target = $region64
    $region63: #{feed_forward.1} parent=5 // pred_region
      %s716 = ssub.s32 %s12, 2
      // Predicated region
      $region65: #{feed_forward.1} parent=63 // pred_check
        %p717 = pneg %p205
      $region66: #{feed_forward.1} parent=63 // pred_check_branch
        %719 = sbr.rel (%p717) target = $region68
      $region67: #{feed_forward.1} parent=63 // pred_region
        %p720 = scmp.lt.s32.totalorder %s25, 1
        %s721 = scalar_select %p720, %s25, 1
        %p722 = scmp.lt.s32.totalorder %s26, 0
        %s723 = scalar_select %p722, %s26, 0
        %s724 = smul.addr %s721, 2
        %s725 = sadd.s32 %s723, %s724
        %s726 = smul.addr %s725, 8
        %s727 = scalar_lea.vmem %s6, %s726
      $region68: #{feed_forward.1} parent=63 // pred_fallthru
        _
    $region64: #{feed_forward.1} parent=5 // pred_fallthru
      _
  $region6: #{feed_forward.1} parent=0 // loop_footer
    %s16 = sadd.s32 1, %s12
  $region7: #{feed_forward.1} parent=0 // loop_footer_branch
    %11 = sbr.rel target = $region3
  $region8: #{feed_forward.1} parent=0 // loop_exit
    _

</llo_original>
